<compile_context>
chip_gen: v5e
topology: v5e:2x2
jax: 0.10.0
libtpu: 0.0.40
codegen_flags: <defaults>
</compile_context>

<pallas_src>
import functools

import jax
import jax.numpy as jnp
from jax.experimental import pallas as pl
from jax.experimental.pallas import tpu as pltpu

_LANE = 128


def _round_up(n, m):
    return ((n + m - 1) // m) * m


def _fused_backbone_kernel(patch_ref, wconv_ref, bconv_ref, wcls_ref, bcls_ref,
                           o_ref, *, Bt, HW):
    """One grid step = one tile of Bt batch elements.

    patch_ref: (Bt*HW, Kp)  im2col'd conv input (lane-dense, zero-padded K)
    wconv_ref: (Kp, Cp)     conv weights reshaped to a GEMM operand
    bconv_ref: (1, Cp)      conv bias
    wcls_ref : (Cp, NCp)    classifier weight, pre-scaled by 1/(H*W)
    bcls_ref : (1, NCp)     classifier bias
    o_ref    : (Bt, NCp)    logits tile for this grid step
    """
    # All 9 conv taps for all Bt images in a single MXU GEMM, f32 accumulate.
    h = jnp.dot(patch_ref[...], wconv_ref[...],
                preferred_element_type=jnp.float32)          # (Bt*HW, Cp)

    # conv bias + ReLU (VPU). Bias broadcast happens once (no loop).
    h = jnp.maximum(h + bconv_ref[...], 0.0)

    # Global average pool: spatial sum here, 1/(H*W) folded into wcls.
    pooled = jnp.sum(h.reshape(Bt, HW, h.shape[-1]), axis=1)  # (Bt, Cp)

    # Classifier head: (Bt, Cp) @ (Cp, NCp) + bias.
    logits = jnp.dot(pooled, wcls_ref[...],
                     preferred_element_type=jnp.float32) + bcls_ref[...]

    o_ref[...] = logits.astype(o_ref.dtype)


def my_classifier_model_forward(image_nchw, params, *, batch_tile=8):
    """Forward pass of MyClassifierModel on an NCHW image batch."""
    wconv, bconv, wcls, bcls = (params["wconv"], params["bconv"],
                                params["wcls"], params["bcls"])
    B, C_in, H, W = image_nchw.shape
    C_feat = wconv.shape[-1]
    NC = wcls.shape[-1]
    HW = H * W

    Bt = min(batch_tile, B)
    Bp = _round_up(B, Bt)                    # batch padded to a multiple of Bt
    K = 9 * C_in
    Kp = _round_up(K, _LANE)                 # lane-dense GEMM contraction dim
    Cp = _round_up(C_feat, _LANE)            # lane-dense feature dim
    NCp = _round_up(NC, _LANE)               # lane-dense output dim (unmasked vst)

    # ---- layout glue (plain JAX): NCHW -> NHWC, pad-by-1, im2col ------------
    x_nhwc = jnp.transpose(image_nchw, (0, 2, 3, 1)).astype(jnp.float32)
    x_padded = jnp.pad(x_nhwc, ((0, Bp - B), (1, 1), (1, 1), (0, 0)))
    taps = [x_padded[:, ky:ky + H, kx:kx + W, :]
            for ky in range(3) for kx in range(3)]
    patches = jnp.stack(taps, axis=3).reshape(Bp, HW, K)       # (Bp, HW, 9*C_in)
    patches = jnp.pad(patches, ((0, 0), (0, 0), (0, Kp - K)))
    patches = patches.reshape(Bp * HW, Kp)

    # ---- weight packing, zero-padded to lane-dense shapes -------------------
    wconv_mat = jnp.pad(wconv.reshape(K, C_feat),
                        ((0, Kp - K), (0, Cp - C_feat)))
    bconv_row = jnp.pad(bconv.reshape(1, C_feat),
                        ((0, 0), (0, Cp - C_feat)))
    wcls_mat = jnp.pad(wcls / float(HW),                       # fold GAP scale
                       ((0, Cp - C_feat), (0, NCp - NC)))
    bcls_row = jnp.pad(bcls.reshape(1, NC), ((0, 0), (0, NCp - NC)))

    kernel = functools.partial(_fused_backbone_kernel, Bt=Bt, HW=HW)

    out_padded = pl.pallas_call(
        kernel,
        out_shape=jax.ShapeDtypeStruct((Bp, NCp), jnp.float32),
        grid_spec=pltpu.PrefetchScalarGridSpec(
            num_scalar_prefetch=0,
            grid=(Bp // Bt,),
            in_specs=[
                pl.BlockSpec((Bt * HW, Kp), lambda b: (b, 0)),
                pl.BlockSpec((Kp, Cp), lambda b: (0, 0)),
                pl.BlockSpec((1, Cp), lambda b: (0, 0)),
                pl.BlockSpec((Cp, NCp), lambda b: (0, 0)),
                pl.BlockSpec((1, NCp), lambda b: (0, 0)),
            ],
            # Per-tile output block: batch axis is a normal (parallel) output
            # axis; each step writes its own (Bt, NCp) tile with full-lane vst.
            out_specs=pl.BlockSpec((Bt, NCp), lambda b: (b, 0)),
        ),
        compiler_params=pltpu.CompilerParams(
            dimension_semantics=("parallel",)),
    )(patches, wconv_mat, bconv_row, wcls_mat, bcls_row)

    return out_padded[:B, :NC]


def _reference_forward(image_nchw, params):
    """Pure-JAX reference for correctness checking."""
    x = jnp.transpose(image_nchw, (0, 2, 3, 1))  # NHWC
    y = jax.lax.conv_general_dilated(
        x, params["wconv"], window_strides=(1, 1), padding="SAME",
        dimension_numbers=("NHWC", "HWIO", "NHWC"))
    y = jnp.maximum(y + params["bconv"][0], 0.0)
    pooled = jnp.mean(y, axis=(1, 2))  # (B, C_feat)
    return pooled @ params["wcls"] + params["bcls"][0]


def init_params(C_in, C_feat, num_classes):
    """Deterministic synthetic parameter init (no checkpoint loading)."""
    kw, kb, cw, cb = jax.random.split(jax.random.PRNGKey(42), 4)
    return {
        "wconv": 0.1 * jax.random.normal(kw, (3, 3, C_in, C_feat), jnp.float32),
        "bconv": 0.1 * jax.random.normal(kb, (1, C_feat), jnp.float32),
        "wcls": 0.1 * jax.random.normal(cw, (C_feat, num_classes), jnp.float32),
        "bcls": 0.1 * jax.random.normal(cb, (1, num_classes), jnp.float32),
    }


if __name__ == "__main__":
    B, C_in, H, W = 2, 4, 16, 16
    C_feat, num_classes = 8, 10

    params = init_params(C_in, C_feat, num_classes)
    image = jax.random.normal(jax.random.PRNGKey(0), (B, C_in, H, W),
                              jnp.float32)  # PyTorch-style NCHW input

    out = my_classifier_model_forward(image, params)
    out = jax.block_until_ready(out)

    ref = _reference_forward(image, params)
    assert out.shape == (B, num_classes)
    assert jnp.allclose(out, ref, atol=1e-4, rtol=1e-4), (
        f"mismatch: max abs err {jnp.max(jnp.abs(out - ref))}")

    print("KERNEL_OK")
</pallas_src>

<mosaic_0001>
module attributes {stable_mosaic.version = 11 : i64} {
  func.func @_fused_backbone_kernel(%arg0: i32, %arg1: memref<512x128xf32, #tpu.memory_space<vmem>>, %arg2: memref<128x128xf32, #tpu.memory_space<vmem>>, %arg3: memref<1x128xf32, #tpu.memory_space<vmem>>, %arg4: memref<128x128xf32, #tpu.memory_space<vmem>>, %arg5: memref<1x128xf32, #tpu.memory_space<vmem>>, %arg6: memref<2x128xf32, #tpu.memory_space<vmem>>) attributes {dimension_semantics = [#tpu.dimension_semantics<parallel>], iteration_bounds = array<i64: 1>, scalar_prefetch = 0 : i64, scratch_operands = 0 : i64, tpu.core_type = #tpu.core_type<tc>, window_params = [{transform_indices = @transform_0, window_bounds = array<i64: 512, 128>}, {pipeline_mode = #tpu.pipeline_mode<synchronous>, transform_indices = @transform_1, window_bounds = array<i64: 128, 128>}, {pipeline_mode = #tpu.pipeline_mode<synchronous>, transform_indices = @transform_2, window_bounds = array<i64: 1, 128>}, {pipeline_mode = #tpu.pipeline_mode<synchronous>, transform_indices = @transform_3, window_bounds = array<i64: 128, 128>}, {pipeline_mode = #tpu.pipeline_mode<synchronous>, transform_indices = @transform_4, window_bounds = array<i64: 1, 128>}, {transform_indices = @transform_5, window_bounds = array<i64: 2, 128>}]} {
    %c0 = arith.constant 0 : index
    %c0_0 = arith.constant 0 : index
    %0 = vector.load %arg1[%c0, %c0_0] : memref<512x128xf32, #tpu.memory_space<vmem>>, vector<512x128xf32>
    %c0_1 = arith.constant 0 : index
    %c0_2 = arith.constant 0 : index
    %1 = vector.load %arg2[%c0_1, %c0_2] : memref<128x128xf32, #tpu.memory_space<vmem>>, vector<128x128xf32>
    %cst = arith.constant dense<0.000000e+00> : vector<512x128xf32>
    %2 = tpu.matmul %0, %1, %cst {dimension_numbers = #tpu.dot_dimension_numbers<[1], [0], [0], [1], [0, 0, 1, 1], [], []>} : vector<512x128xf32>, vector<128x128xf32>, vector<512x128xf32> -> vector<512x128xf32>
    %c0_3 = arith.constant 0 : index
    %c0_4 = arith.constant 0 : index
    %3 = vector.load %arg3[%c0_3, %c0_4] : memref<1x128xf32, #tpu.memory_space<vmem>>, vector<1x128xf32>
    %4 = vector.broadcast %3 : vector<1x128xf32> to vector<512x128xf32>
    %5 = arith.addf %2, %4 : vector<512x128xf32>
    %cst_5 = arith.constant 0.000000e+00 : f32
    %6 = vector.broadcast %cst_5 : f32 to vector<512x128xf32>
    %7 = arith.maximumf %5, %6 : vector<512x128xf32>
    %8 = vector.shape_cast %7 : vector<512x128xf32> to vector<2x256x128xf32>
    %cst_6 = arith.constant dense<0.000000e+00> : vector<2x128xf32>
    %9 = vector.multi_reduction <add>, %8, %cst_6 [1] : vector<2x256x128xf32> to vector<2x128xf32>
    %c0_7 = arith.constant 0 : index
    %c0_8 = arith.constant 0 : index
    %10 = vector.load %arg4[%c0_7, %c0_8] : memref<128x128xf32, #tpu.memory_space<vmem>>, vector<128x128xf32>
    %cst_9 = arith.constant dense<0.000000e+00> : vector<2x128xf32>
    %11 = tpu.matmul %9, %10, %cst_9 {dimension_numbers = #tpu.dot_dimension_numbers<[1], [0], [0], [1], [0, 0, 1, 1], [], []>} : vector<2x128xf32>, vector<128x128xf32>, vector<2x128xf32> -> vector<2x128xf32>
    %c0_10 = arith.constant 0 : index
    %c0_11 = arith.constant 0 : index
    %12 = vector.load %arg5[%c0_10, %c0_11] : memref<1x128xf32, #tpu.memory_space<vmem>>, vector<1x128xf32>
    %13 = vector.broadcast %12 : vector<1x128xf32> to vector<2x128xf32>
    %14 = arith.addf %11, %13 : vector<2x128xf32>
    %c0_12 = arith.constant 0 : index
    %c0_13 = arith.constant 0 : index
    %15 = vector.load %arg6[%c0_12, %c0_13] : memref<2x128xf32, #tpu.memory_space<vmem>>, vector<2x128xf32>
    tpu.vector_store %arg6[%c0_12, %c0_13], %14 {strides = array<i32>} : memref<2x128xf32, #tpu.memory_space<vmem>>, vector<2x128xf32>,
    return
  }
  func.func @transform_0(%arg0: i32) -> (i32, i32) {
    %c0_i32 = arith.constant 0 : i32
    %c0_i32_0 = arith.constant 0 : i32
    return %arg0, %c0_i32 : i32, i32
  }
  func.func @transform_1(%arg0: i32) -> (i32, i32) {
    %c0_i32 = arith.constant 0 : i32
    %c0_i32_0 = arith.constant 0 : i32
    %c0_i32_1 = arith.constant 0 : i32
    return %c0_i32, %c0_i32_0 : i32, i32
  }
  func.func @transform_2(%arg0: i32) -> (i32, i32) {
    %c0_i32 = arith.constant 0 : i32
    %c0_i32_0 = arith.constant 0 : i32
    %c0_i32_1 = arith.constant 0 : i32
    return %c0_i32, %c0_i32_0 : i32, i32
  }
  func.func @transform_3(%arg0: i32) -> (i32, i32) {
    %c0_i32 = arith.constant 0 : i32
    %c0_i32_0 = arith.constant 0 : i32
    %c0_i32_1 = arith.constant 0 : i32
    return %c0_i32, %c0_i32_0 : i32, i32
  }
  func.func @transform_4(%arg0: i32) -> (i32, i32) {
    %c0_i32 = arith.constant 0 : i32
    %c0_i32_0 = arith.constant 0 : i32
    %c0_i32_1 = arith.constant 0 : i32
    return %c0_i32, %c0_i32_0 : i32, i32
  }
  func.func @transform_5(%arg0: i32) -> (i32, i32) {
    %c0_i32 = arith.constant 0 : i32
    %c0_i32_0 = arith.constant 0 : i32
    return %arg0, %c0_i32 : i32, i32
  }
}

</mosaic_0001>

<llo_original>
// kernel: tpu_custom_call.1
$region0: #{tpu_custom_call.1}
  #allocation0 [shape = 'u32[]', space=smem, size = 0x4, offset = 0x4, fixed_abs, tag = 'smem constant byte address 0x4 - core index']
  #allocation1 [shape = 'u32[72,128]{1,0:T(1,128)}', space=vmem, size = 0x9000, scoped, tag = 'internal scratch']
  %s0 = inlined_call_operand.hbm [shape: f32[512,128], index: 0, kind: input, shape index: {}]
  %s1 = inlined_call_operand.hbm [shape: f32[128,128], index: 1, kind: input, shape index: {}]
  %s2 = inlined_call_operand.vmem [shape: f32[1,128], index: 2, kind: input, shape index: {}]
  %s3 = inlined_call_operand.hbm [shape: f32[128,128], index: 3, kind: input, shape index: {}]
  %s4 = inlined_call_operand.vmem [shape: f32[1,128], index: 4, kind: input, shape index: {}]
  %s5 = inlined_call_operand.hbm [shape: f32[2,128], index: 5, kind: output, shape index: {}]
  %s6 = sld [smem:[#allocation0]]
  $region42: #{tpu_custom_call.1} parent=0
    _
  %s8 = ssub.s32 1, %s6
  %s9 = scalar_select 0, %s8, %s6
  $region1: #{tpu_custom_call.1} parent=0
    #allocation2 [shape = 'u8[262144]{0}', space=vmem, size = 0x40000, scoped, tag = 'input window, operand 0, single buffered']
    #allocation3 [shape = 's32[1]{0}', space=sflag, size = 0x4, scoped, tag = 'scoped memory for tpu_custom_call.1']
    #allocation4 [shape = 's32[1]{0}', space=sflag, size = 0x4, scoped, tag = 'scoped memory for tpu_custom_call.1']
    #allocation5 [shape = 'u8[65536]{0}', space=vmem, size = 0x10000, scoped, tag = 'input window, operand 1, single buffered']
    #allocation6 [shape = 's32[1]{0}', space=sflag, size = 0x4, scoped, tag = 'scoped memory for tpu_custom_call.1']
    #allocation7 [shape = 'u8[65536]{0}', space=vmem, size = 0x10000, scoped, tag = 'input window, operand 3, single buffered']
    #allocation8 [shape = 'u8[1024]{0}', space=vmem, size = 0x400, scoped, tag = 'output window, operand 0, single buffered']
    %10 = vsyncpa [#allocation3], 0
    %11 = vsyncpa [#allocation6], 0
    %12 = vsyncpa [#allocation4], 0
    // Predicated region
    $region2: #{tpu_custom_call.1} parent=1 // pred_check
      _
    $region3: #{tpu_custom_call.1} parent=1 // pred_check_branch
      %14 = sbr.rel (0) target = $region5
    $region4: #{tpu_custom_call.1} parent=1 // pred_region
      %16 = vsyncadd [#allocation3], 0
      %s17 = sshll.u32 %s0, 4
      %s18 = int_to_ptr.hbm [resolvable:$true] %s17
      %s19 = sshll.u32 [#allocation2], 4
      %s20 = int_to_ptr.vmem [resolvable:$true] %s19
      %25 = dma.hbm_to_vmem [thread:$0]  %s18, 8192, %s20, [#allocation3], 128, 128, 8
    $region5: #{tpu_custom_call.1} parent=1 // pred_fallthru
      _
    // Predicated region
    $region6: #{tpu_custom_call.1} parent=1 // pred_check
      _
    $region7: #{tpu_custom_call.1} parent=1 // pred_check_branch
      %27 = sbr.rel (0) target = $region9
    $region8: #{tpu_custom_call.1} parent=1 // pred_region
      %29 = vsyncadd [#allocation6], 0
      %s30 = sshll.u32 %s1, 4
      %s31 = int_to_ptr.hbm [resolvable:$true] %s30
      %s32 = sshll.u32 [#allocation5], 4
      %s33 = int_to_ptr.vmem [resolvable:$true] %s32
      %38 = dma.hbm_to_vmem [thread:$0]  %s31, 2048, %s33, [#allocation6], 128, 128, 8
    $region9: #{tpu_custom_call.1} parent=1 // pred_fallthru
      _
    // Predicated region
    $region10: #{tpu_custom_call.1} parent=1 // pred_check
      _
    $region11: #{tpu_custom_call.1} parent=1 // pred_check_branch
      %40 = sbr.rel (0) target = $region13
    $region12: #{tpu_custom_call.1} parent=1 // pred_region
      _
    $region13: #{tpu_custom_call.1} parent=1 // pred_fallthru
      _
    // Predicated region
    $region14: #{tpu_custom_call.1} parent=1 // pred_check
      _
    $region15: #{tpu_custom_call.1} parent=1 // pred_check_branch
      %42 = sbr.rel (0) target = $region17
    $region16: #{tpu_custom_call.1} parent=1 // pred_region
      %44 = vsyncadd [#allocation6], 0
      %s45 = sshll.u32 %s3, 4
      %s46 = int_to_ptr.hbm [resolvable:$true] %s45
      %s47 = sshll.u32 [#allocation7], 4
      %s48 = int_to_ptr.vmem [resolvable:$true] %s47
      %53 = dma.hbm_to_vmem [thread:$0]  %s46, 2048, %s48, [#allocation6], 128, 128, 8
    $region17: #{tpu_custom_call.1} parent=1 // pred_fallthru
      _
    // Predicated region
    $region18: #{tpu_custom_call.1} parent=1 // pred_check
      _
    $region19: #{tpu_custom_call.1} parent=1 // pred_check_branch
      %55 = sbr.rel (0) target = $region21
    $region20: #{tpu_custom_call.1} parent=1 // pred_region
      _
    $region21: #{tpu_custom_call.1} parent=1 // pred_fallthru
      _
    // Predicated region
    $region22: #{tpu_custom_call.1} parent=1 // pred_check
      _
    $region23: #{tpu_custom_call.1} parent=1 // pred_check_branch
      %57 = sbr.rel (0) target = $region25
    $region24: #{tpu_custom_call.1} parent=1 // pred_region
      %59 = dma.done [#allocation3], 8192
    $region25: #{tpu_custom_call.1} parent=1 // pred_fallthru
      _
    // Predicated region
    $region26: #{tpu_custom_call.1} parent=1 // pred_check
      _
    $region27: #{tpu_custom_call.1} parent=1 // pred_check_branch
      %61 = sbr.rel (0) target = $region29
    $region28: #{tpu_custom_call.1} parent=1 // pred_region
      %63 = dma.done [#allocation6], 2048
    $region29: #{tpu_custom_call.1} parent=1 // pred_fallthru
      _
    // Predicated region
    $region30: #{tpu_custom_call.1} parent=1 // pred_check
      _
    $region31: #{tpu_custom_call.1} parent=1 // pred_check_branch
      %65 = sbr.rel (0) target = $region33
    $region32: #{tpu_custom_call.1} parent=1 // pred_region
      %67 = dma.done [#allocation6], 2048
    $region33: #{tpu_custom_call.1} parent=1 // pred_fallthru
      _
    %v68 = vld [vmem:[#allocation2] sm:$0xff]
    %v69 = vld [vmem:[#allocation2 + $0x8] sm:$0xff]
    %v70 = vld [vmem:[#allocation2 + $0x10] sm:$0xff]
    %v71 = vld [vmem:[#allocation2 + $0x18] sm:$0xff]
    %v72 = vld [vmem:[#allocation2 + $0x20] sm:$0xff]
    %v73 = vld [vmem:[#allocation2 + $0x28] sm:$0xff]
    %v74 = vld [vmem:[#allocation2 + $0x30] sm:$0xff]
    %v75 = vld [vmem:[#allocation2 + $0x38] sm:$0xff]
    %v76 = vld [vmem:[#allocation2 + $0x40] sm:$0xff]
    %v77 = vld [vmem:[#allocation2 + $0x48] sm:$0xff]
    %v78 = vld [vmem:[#allocation2 + $0x50] sm:$0xff]
    %v79 = vld [vmem:[#allocation2 + $0x58] sm:$0xff]
    %v80 = vld [vmem:[#allocation2 + $0x60] sm:$0xff]
    %v81 = vld [vmem:[#allocation2 + $0x68] sm:$0xff]
    %v82 = vld [vmem:[#allocation2 + $0x70] sm:$0xff]
    %v83 = vld [vmem:[#allocation2 + $0x78] sm:$0xff]
    %v84 = vld [vmem:[#allocation2 + $0x80] sm:$0xff]
    %v85 = vld [vmem:[#allocation2 + $0x88] sm:$0xff]
    %v86 = vld [vmem:[#allocation2 + $0x90] sm:$0xff]
    %v87 = vld [vmem:[#allocation2 + $0x98] sm:$0xff]
    %v88 = vld [vmem:[#allocation2 + $0xa0] sm:$0xff]
    %v89 = vld [vmem:[#allocation2 + $0xa8] sm:$0xff]
    %v90 = vld [vmem:[#allocation2 + $0xb0] sm:$0xff]
    %v91 = vld [vmem:[#allocation2 + $0xb8] sm:$0xff]
    %v92 = vld [vmem:[#allocation2 + $0xc0] sm:$0xff]
    %v93 = vld [vmem:[#allocation2 + $0xc8] sm:$0xff]
    %v94 = vld [vmem:[#allocation2 + $0xd0] sm:$0xff]
    %v95 = vld [vmem:[#allocation2 + $0xd8] sm:$0xff]
    %v96 = vld [vmem:[#allocation2 + $0xe0] sm:$0xff]
    %v97 = vld [vmem:[#allocation2 + $0xe8] sm:$0xff]
    %v98 = vld [vmem:[#allocation2 + $0xf0] sm:$0xff]
    %v99 = vld [vmem:[#allocation2 + $0xf8] sm:$0xff]
    %v100 = vld [vmem:[#allocation2 + $0x100] sm:$0xff]
    %v101 = vld [vmem:[#allocation2 + $0x108] sm:$0xff]
    %v102 = vld [vmem:[#allocation2 + $0x110] sm:$0xff]
    %v103 = vld [vmem:[#allocation2 + $0x118] sm:$0xff]
    %v104 = vld [vmem:[#allocation2 + $0x120] sm:$0xff]
    %v105 = vld [vmem:[#allocation2 + $0x128] sm:$0xff]
    %v106 = vld [vmem:[#allocation2 + $0x130] sm:$0xff]
    %v107 = vld [vmem:[#allocation2 + $0x138] sm:$0xff]
    %v108 = vld [vmem:[#allocation2 + $0x140] sm:$0xff]
    %v109 = vld [vmem:[#allocation2 + $0x148] sm:$0xff]
    %v110 = vld [vmem:[#allocation2 + $0x150] sm:$0xff]
    %v111 = vld [vmem:[#allocation2 + $0x158] sm:$0xff]
    %v112 = vld [vmem:[#allocation2 + $0x160] sm:$0xff]
    %v113 = vld [vmem:[#allocation2 + $0x168] sm:$0xff]
    %v114 = vld [vmem:[#allocation2 + $0x170] sm:$0xff]
    %v115 = vld [vmem:[#allocation2 + $0x178] sm:$0xff]
    %v116 = vld [vmem:[#allocation2 + $0x180] sm:$0xff]
    %v117 = vld [vmem:[#allocation2 + $0x188] sm:$0xff]
    %v118 = vld [vmem:[#allocation2 + $0x190] sm:$0xff]
    %v119 = vld [vmem:[#allocation2 + $0x198] sm:$0xff]
    %v120 = vld [vmem:[#allocation2 + $0x1a0] sm:$0xff]
    %v121 = vld [vmem:[#allocation2 + $0x1a8] sm:$0xff]
    %v122 = vld [vmem:[#allocation2 + $0x1b0] sm:$0xff]
    %v123 = vld [vmem:[#allocation2 + $0x1b8] sm:$0xff]
    %v124 = vld [vmem:[#allocation2 + $0x1c0] sm:$0xff]
    %v125 = vld [vmem:[#allocation2 + $0x1c8] sm:$0xff]
    %v126 = vld [vmem:[#allocation2 + $0x1d0] sm:$0xff]
    %v127 = vld [vmem:[#allocation2 + $0x1d8] sm:$0xff]
    %v128 = vld [vmem:[#allocation2 + $0x1e0] sm:$0xff]
    %v129 = vld [vmem:[#allocation2 + $0x1e8] sm:$0xff]
    %v130 = vld [vmem:[#allocation2 + $0x1f0] sm:$0xff]
    %v131 = vld [vmem:[#allocation2 + $0x1f8] sm:$0xff]
    %v132 = vld [vmem:[#allocation5] sm:$0xff]
    %v133 = vld [vmem:[#allocation5 + $0x8] sm:$0xff]
    %v134 = vld [vmem:[#allocation5 + $0x10] sm:$0xff]
    %v135 = vld [vmem:[#allocation5 + $0x18] sm:$0xff]
    %v136 = vld [vmem:[#allocation5 + $0x20] sm:$0xff]
    %v137 = vld [vmem:[#allocation5 + $0x28] sm:$0xff]
    %v138 = vld [vmem:[#allocation5 + $0x30] sm:$0xff]
    %v139 = vld [vmem:[#allocation5 + $0x38] sm:$0xff]
    %v140 = vld [vmem:[#allocation5 + $0x40] sm:$0xff]
    %v141 = vld [vmem:[#allocation5 + $0x48] sm:$0xff]
    %v142 = vld [vmem:[#allocation5 + $0x50] sm:$0xff]
    %v143 = vld [vmem:[#allocation5 + $0x58] sm:$0xff]
    %v144 = vld [vmem:[#allocation5 + $0x60] sm:$0xff]
    %v145 = vld [vmem:[#allocation5 + $0x68] sm:$0xff]
    %v146 = vld [vmem:[#allocation5 + $0x70] sm:$0xff]
    %v147 = vld [vmem:[#allocation5 + $0x78] sm:$0xff]
    %v148 = vld [vmem:[%s2] sm:$0x1]
    %v150 = vperm.slane %v148, 0
    %152 = vmatpush.msra.mxu0 %v147
    %153 = vmatpush.msra.mxu0 %v146
    %154 = vmatpush.msra.mxu0 %v145
    %155 = vmatpush.msra.mxu0 %v144
    %156 = vmatpush.msra.mxu0 %v143
    %157 = vmatpush.msra.mxu0 %v142
    %158 = vmatpush.msra.mxu0 %v141
    %159 = vmatpush.msra.mxu0 %v140
    %160 = vmatpush.msra.mxu0 %v139
    %161 = vmatpush.msra.mxu0 %v138
    %162 = vmatpush.msra.mxu0 %v137
    %163 = vmatpush.msra.mxu0 %v136
    %164 = vmatpush.msra.mxu0 %v135
    %165 = vmatpush.msra.mxu0 %v134
    %166 = vmatpush.msra.mxu0 %v133
    %167 = vmatpush.msra.mxu0 %v132
    %168 = vmatmul.f32.gmra.mxu0 %v68
    %v169 = vpop.f32.mrf.mxu0
    %v170 = vadd.f32 %v150, %v169
    %171 = vmatmul.f32.gmra.mxu0 %v69
    %v172 = vpop.f32.mrf.mxu0
    %v173 = vadd.f32 %v150, %v172
    %174 = vmatmul.f32.gmra.mxu0 %v70
    %v175 = vpop.f32.mrf.mxu0
    %v176 = vadd.f32 %v150, %v175
    %177 = vmatmul.f32.gmra.mxu0 %v71
    %v178 = vpop.f32.mrf.mxu0
    %v179 = vadd.f32 %v150, %v178
    %180 = vmatmul.f32.gmra.mxu0 %v72
    %v181 = vpop.f32.mrf.mxu0
    %v182 = vadd.f32 %v150, %v181
    %183 = vmatmul.f32.gmra.mxu0 %v73
    %v184 = vpop.f32.mrf.mxu0
    %v185 = vadd.f32 %v150, %v184
    %186 = vmatmul.f32.gmra.mxu0 %v74
    %v187 = vpop.f32.mrf.mxu0
    %v188 = vadd.f32 %v150, %v187
    %189 = vmatmul.f32.gmra.mxu0 %v75
    %v190 = vpop.f32.mrf.mxu0
    %v191 = vadd.f32 %v150, %v190
    %192 = vmatmul.f32.gmra.mxu0 %v76
    %v193 = vpop.f32.mrf.mxu0
    %v194 = vadd.f32 %v150, %v193
    %195 = vmatmul.f32.gmra.mxu0 %v77
    %v196 = vpop.f32.mrf.mxu0
    %v197 = vadd.f32 %v150, %v196
    %198 = vmatmul.f32.gmra.mxu0 %v78
    %v199 = vpop.f32.mrf.mxu0
    %v200 = vadd.f32 %v150, %v199
    %201 = vmatmul.f32.gmra.mxu0 %v79
    %v202 = vpop.f32.mrf.mxu0
    %v203 = vadd.f32 %v150, %v202
    %204 = vmatmul.f32.gmra.mxu0 %v80
    %v205 = vpop.f32.mrf.mxu0
    %v206 = vadd.f32 %v150, %v205
    %207 = vmatmul.f32.gmra.mxu0 %v81
    %v208 = vpop.f32.mrf.mxu0
    %v209 = vadd.f32 %v150, %v208
    %210 = vmatmul.f32.gmra.mxu0 %v82
    %v211 = vpop.f32.mrf.mxu0
    %v212 = vadd.f32 %v150, %v211
    %213 = vmatmul.f32.gmra.mxu0 %v83
    %v214 = vpop.f32.mrf.mxu0
    %v215 = vadd.f32 %v150, %v214
    %216 = vmatmul.f32.gmra.mxu0 %v84
    %v217 = vpop.f32.mrf.mxu0
    %v218 = vadd.f32 %v150, %v217
    %219 = vmatmul.f32.gmra.mxu0 %v85
    %v220 = vpop.f32.mrf.mxu0
    %v221 = vadd.f32 %v150, %v220
    %222 = vmatmul.f32.gmra.mxu0 %v86
    %v223 = vpop.f32.mrf.mxu0
    %v224 = vadd.f32 %v150, %v223
    %225 = vmatmul.f32.gmra.mxu0 %v87
    %v226 = vpop.f32.mrf.mxu0
    %v227 = vadd.f32 %v150, %v226
    %228 = vmatmul.f32.gmra.mxu0 %v88
    %v229 = vpop.f32.mrf.mxu0
    %v230 = vadd.f32 %v150, %v229
    %231 = vmatmul.f32.gmra.mxu0 %v89
    %v232 = vpop.f32.mrf.mxu0
    %v233 = vadd.f32 %v150, %v232
    %234 = vmatmul.f32.gmra.mxu0 %v90
    %v235 = vpop.f32.mrf.mxu0
    %v236 = vadd.f32 %v150, %v235
    %237 = vmatmul.f32.gmra.mxu0 %v91
    %v238 = vpop.f32.mrf.mxu0
    %v239 = vadd.f32 %v150, %v238
    %240 = vmatmul.f32.gmra.mxu0 %v92
    %v241 = vpop.f32.mrf.mxu0
    %v242 = vadd.f32 %v150, %v241
    %243 = vmatmul.f32.gmra.mxu0 %v93
    %v244 = vpop.f32.mrf.mxu0
    %v245 = vadd.f32 %v150, %v244
    %246 = vmatmul.f32.gmra.mxu0 %v94
    %v247 = vpop.f32.mrf.mxu0
    %v248 = vadd.f32 %v150, %v247
    %249 = vmatmul.f32.gmra.mxu0 %v95
    %v250 = vpop.f32.mrf.mxu0
    %v251 = vadd.f32 %v150, %v250
    %252 = vmatmul.f32.gmra.mxu0 %v96
    %v253 = vpop.f32.mrf.mxu0
    %v254 = vadd.f32 %v150, %v253
    %255 = vmatmul.f32.gmra.mxu0 %v97
    %v256 = vpop.f32.mrf.mxu0
    %v257 = vadd.f32 %v150, %v256
    %258 = vmatmul.f32.gmra.mxu0 %v98
    %v259 = vpop.f32.mrf.mxu0
    %v260 = vadd.f32 %v150, %v259
    %261 = vmatmul.f32.gmra.mxu0 %v99
    %v262 = vpop.f32.mrf.mxu0
    %v263 = vadd.f32 %v150, %v262
    %264 = vmatmul.f32.gmra.mxu0 %v100
    %v265 = vpop.f32.mrf.mxu0
    %v266 = vadd.f32 %v150, %v265
    %267 = vmatmul.f32.gmra.mxu0 %v101
    %v268 = vpop.f32.mrf.mxu0
    %v269 = vadd.f32 %v150, %v268
    %270 = vmatmul.f32.gmra.mxu0 %v102
    %v271 = vpop.f32.mrf.mxu0
    %v272 = vadd.f32 %v150, %v271
    %273 = vmatmul.f32.gmra.mxu0 %v103
    %v274 = vpop.f32.mrf.mxu0
    %v275 = vadd.f32 %v150, %v274
    %276 = vmatmul.f32.gmra.mxu0 %v104
    %v277 = vpop.f32.mrf.mxu0
    %v278 = vadd.f32 %v150, %v277
    %279 = vmatmul.f32.gmra.mxu0 %v105
    %v280 = vpop.f32.mrf.mxu0
    %v281 = vadd.f32 %v150, %v280
    %282 = vmatmul.f32.gmra.mxu0 %v106
    %v283 = vpop.f32.mrf.mxu0
    %v284 = vadd.f32 %v150, %v283
    %285 = vmatmul.f32.gmra.mxu0 %v107
    %v286 = vpop.f32.mrf.mxu0
    %v287 = vadd.f32 %v150, %v286
    %288 = vmatmul.f32.gmra.mxu0 %v108
    %v289 = vpop.f32.mrf.mxu0
    %v290 = vadd.f32 %v150, %v289
    %291 = vmatmul.f32.gmra.mxu0 %v109
    %v292 = vpop.f32.mrf.mxu0
    %v293 = vadd.f32 %v150, %v292
    %294 = vmatmul.f32.gmra.mxu0 %v110
    %v295 = vpop.f32.mrf.mxu0
    %v296 = vadd.f32 %v150, %v295
    %297 = vmatmul.f32.gmra.mxu0 %v111
    %v298 = vpop.f32.mrf.mxu0
    %v299 = vadd.f32 %v150, %v298
    %300 = vmatmul.f32.gmra.mxu0 %v112
    %v301 = vpop.f32.mrf.mxu0
    %v302 = vadd.f32 %v150, %v301
    %303 = vmatmul.f32.gmra.mxu0 %v113
    %v304 = vpop.f32.mrf.mxu0
    %v305 = vadd.f32 %v150, %v304
    %306 = vmatmul.f32.gmra.mxu0 %v114
    %v307 = vpop.f32.mrf.mxu0
    %v308 = vadd.f32 %v150, %v307
    %309 = vmatmul.f32.gmra.mxu0 %v115
    %v310 = vpop.f32.mrf.mxu0
    %v311 = vadd.f32 %v150, %v310
    %312 = vmatmul.f32.gmra.mxu0 %v116
    %v313 = vpop.f32.mrf.mxu0
    %v314 = vadd.f32 %v150, %v313
    %315 = vmatmul.f32.gmra.mxu0 %v117
    %v316 = vpop.f32.mrf.mxu0
    %v317 = vadd.f32 %v150, %v316
    %318 = vmatmul.f32.gmra.mxu0 %v118
    %v319 = vpop.f32.mrf.mxu0
    %v320 = vadd.f32 %v150, %v319
    %321 = vmatmul.f32.gmra.mxu0 %v119
    %v322 = vpop.f32.mrf.mxu0
    %v323 = vadd.f32 %v150, %v322
    %324 = vmatmul.f32.gmra.mxu0 %v120
    %v325 = vpop.f32.mrf.mxu0
    %v326 = vadd.f32 %v150, %v325
    %327 = vmatmul.f32.gmra.mxu0 %v121
    %v328 = vpop.f32.mrf.mxu0
    %v329 = vadd.f32 %v150, %v328
    %330 = vmatmul.f32.gmra.mxu0 %v122
    %v331 = vpop.f32.mrf.mxu0
    %v332 = vadd.f32 %v150, %v331
    %333 = vmatmul.f32.gmra.mxu0 %v123
    %v334 = vpop.f32.mrf.mxu0
    %v335 = vadd.f32 %v150, %v334
    %336 = vmatmul.f32.gmra.mxu0 %v124
    %v337 = vpop.f32.mrf.mxu0
    %v338 = vadd.f32 %v150, %v337
    %339 = vmatmul.f32.gmra.mxu0 %v125
    %v340 = vpop.f32.mrf.mxu0
    %v341 = vadd.f32 %v150, %v340
    %342 = vmatmul.f32.gmra.mxu0 %v126
    %v343 = vpop.f32.mrf.mxu0
    %v344 = vadd.f32 %v150, %v343
    %345 = vmatmul.f32.gmra.mxu0 %v127
    %v346 = vpop.f32.mrf.mxu0
    %v347 = vadd.f32 %v150, %v346
    %348 = vmatmul.f32.gmra.mxu0 %v128
    %v349 = vpop.f32.mrf.mxu0
    %v350 = vadd.f32 %v150, %v349
    %351 = vmatmul.f32.gmra.mxu0 %v129
    %v352 = vpop.f32.mrf.mxu0
    %v353 = vadd.f32 %v150, %v352
    %354 = vmatmul.f32.gmra.mxu0 %v130
    %v355 = vpop.f32.mrf.mxu0
    %v356 = vadd.f32 %v150, %v355
    %357 = vmatmul.f32.gmra.mxu0 %v131
    %v358 = vpop.f32.mrf.mxu0
    %v359 = vadd.f32 %v150, %v358
    %360 = vdwg.mxu0
    %v361 = vmax.f32 %v170, 0.0
    %v362 = vmax.f32 %v173, 0.0
    %v363 = vmax.f32 %v176, 0.0
    %v364 = vmax.f32 %v179, 0.0
    %v365 = vmax.f32 %v182, 0.0
    %v366 = vmax.f32 %v185, 0.0
    %v367 = vmax.f32 %v188, 0.0
    %v368 = vmax.f32 %v191, 0.0
    %v369 = vmax.f32 %v194, 0.0
    %v370 = vmax.f32 %v197, 0.0
    %v371 = vmax.f32 %v200, 0.0
    %v372 = vmax.f32 %v203, 0.0
    %v373 = vmax.f32 %v206, 0.0
    %v374 = vmax.f32 %v209, 0.0
    %v375 = vmax.f32 %v212, 0.0
    %v376 = vmax.f32 %v215, 0.0
    %v377 = vmax.f32 %v218, 0.0
    %v378 = vmax.f32 %v221, 0.0
    %v379 = vmax.f32 %v224, 0.0
    %v380 = vmax.f32 %v227, 0.0
    %v381 = vmax.f32 %v230, 0.0
    %v382 = vmax.f32 %v233, 0.0
    %v383 = vmax.f32 %v236, 0.0
    %v384 = vmax.f32 %v239, 0.0
    %v385 = vmax.f32 %v242, 0.0
    %v386 = vmax.f32 %v245, 0.0
    %v387 = vmax.f32 %v248, 0.0
    %v388 = vmax.f32 %v251, 0.0
    %v389 = vmax.f32 %v254, 0.0
    %v390 = vmax.f32 %v257, 0.0
    %v391 = vmax.f32 %v260, 0.0
    %v392 = vmax.f32 %v263, 0.0
    %v393 = vmax.f32 %v266, 0.0
    %v394 = vmax.f32 %v269, 0.0
    %v395 = vmax.f32 %v272, 0.0
    %v396 = vmax.f32 %v275, 0.0
    %v397 = vmax.f32 %v278, 0.0
    %v398 = vmax.f32 %v281, 0.0
    %v399 = vmax.f32 %v284, 0.0
    %v400 = vmax.f32 %v287, 0.0
    %v401 = vmax.f32 %v290, 0.0
    %v402 = vmax.f32 %v293, 0.0
    %v403 = vmax.f32 %v296, 0.0
    %v404 = vmax.f32 %v299, 0.0
    %v405 = vmax.f32 %v302, 0.0
    %v406 = vmax.f32 %v305, 0.0
    %v407 = vmax.f32 %v308, 0.0
    %v408 = vmax.f32 %v311, 0.0
    %v409 = vmax.f32 %v314, 0.0
    %v410 = vmax.f32 %v317, 0.0
    %v411 = vmax.f32 %v320, 0.0
    %v412 = vmax.f32 %v323, 0.0
    %v413 = vmax.f32 %v326, 0.0
    %v414 = vmax.f32 %v329, 0.0
    %v415 = vmax.f32 %v332, 0.0
    %v416 = vmax.f32 %v335, 0.0
    %v417 = vmax.f32 %v338, 0.0
    %v418 = vmax.f32 %v341, 0.0
    %v419 = vmax.f32 %v344, 0.0
    %v420 = vmax.f32 %v347, 0.0
    %v421 = vmax.f32 %v350, 0.0
    %v422 = vmax.f32 %v353, 0.0
    %v423 = vmax.f32 %v356, 0.0
    %v424 = vmax.f32 %v359, 0.0
    %v425 = vadd.f32 %v361, %v362
    %v426 = vadd.f32 %v425, %v363
    %v427 = vadd.f32 %v426, %v364
    %v428 = vadd.f32 %v427, %v365
    %v429 = vadd.f32 %v428, %v366
    %v430 = vadd.f32 %v429, %v367
    %v431 = vadd.f32 %v430, %v368
    %v432 = vadd.f32 %v431, %v369
    %v433 = vadd.f32 %v432, %v370
    %v434 = vadd.f32 %v433, %v371
    %v435 = vadd.f32 %v434, %v372
    %v436 = vadd.f32 %v435, %v373
    %v437 = vadd.f32 %v436, %v374
    %v438 = vadd.f32 %v437, %v375
    %v439 = vadd.f32 %v438, %v376
    %v440 = vadd.f32 %v439, %v377
    %v441 = vadd.f32 %v440, %v378
    %v442 = vadd.f32 %v441, %v379
    %v443 = vadd.f32 %v442, %v380
    %v444 = vadd.f32 %v443, %v381
    %v445 = vadd.f32 %v444, %v382
    %v446 = vadd.f32 %v445, %v383
    %v447 = vadd.f32 %v446, %v384
    %v448 = vadd.f32 %v447, %v385
    %v449 = vadd.f32 %v448, %v386
    %v450 = vadd.f32 %v449, %v387
    %v451 = vadd.f32 %v450, %v388
    %v452 = vadd.f32 %v451, %v389
    %v453 = vadd.f32 %v452, %v390
    %v454 = vadd.f32 %v453, %v391
    %v455 = vadd.f32 %v454, %v392
    %v456 = vrot.slane %v455, 4
    %v457 = vadd.f32 %v455, %v456
    %v458 = vrot.slane %v457, 2
    %v459 = vadd.f32 %v457, %v458
    %v460 = vrot.slane %v459, 1
    %v461 = vadd.f32 %v459, %v460
    %v462 = vadd.f32 %v393, %v394
    %v463 = vadd.f32 %v462, %v395
    %v464 = vadd.f32 %v463, %v396
    %v465 = vadd.f32 %v464, %v397
    %v466 = vadd.f32 %v465, %v398
    %v467 = vadd.f32 %v466, %v399
    %v468 = vadd.f32 %v467, %v400
    %v469 = vadd.f32 %v468, %v401
    %v470 = vadd.f32 %v469, %v402
    %v471 = vadd.f32 %v470, %v403
    %v472 = vadd.f32 %v471, %v404
    %v473 = vadd.f32 %v472, %v405
    %v474 = vadd.f32 %v473, %v406
    %v475 = vadd.f32 %v474, %v407
    %v476 = vadd.f32 %v475, %v408
    %v477 = vadd.f32 %v476, %v409
    %v478 = vadd.f32 %v477, %v410
    %v479 = vadd.f32 %v478, %v411
    %v480 = vadd.f32 %v479, %v412
    %v481 = vadd.f32 %v480, %v413
    %v482 = vadd.f32 %v481, %v414
    %v483 = vadd.f32 %v482, %v415
    %v484 = vadd.f32 %v483, %v416
    %v485 = vadd.f32 %v484, %v417
    %v486 = vadd.f32 %v485, %v418
    %v487 = vadd.f32 %v486, %v419
    %v488 = vadd.f32 %v487, %v420
    %v489 = vadd.f32 %v488, %v421
    %v490 = vadd.f32 %v489, %v422
    %v491 = vadd.f32 %v490, %v423
    %v492 = vadd.f32 %v491, %v424
    %v493 = vrot.slane %v492, 4
    %v494 = vadd.f32 %v492, %v493
    %v495 = vrot.slane %v494, 2
    %v496 = vadd.f32 %v494, %v495
    %v497 = vrot.slane %v496, 1
    %v498 = vadd.f32 %v496, %v497
    %v499 = vld [vmem:[#allocation7] sm:$0xff]
    %v500 = vld [vmem:[#allocation7 + $0x8] sm:$0xff]
    %v501 = vld [vmem:[#allocation7 + $0x10] sm:$0xff]
    %v502 = vld [vmem:[#allocation7 + $0x18] sm:$0xff]
    %v503 = vld [vmem:[#allocation7 + $0x20] sm:$0xff]
    %v504 = vld [vmem:[#allocation7 + $0x28] sm:$0xff]
    %v505 = vld [vmem:[#allocation7 + $0x30] sm:$0xff]
    %v506 = vld [vmem:[#allocation7 + $0x38] sm:$0xff]
    %v507 = vld [vmem:[#allocation7 + $0x40] sm:$0xff]
    %v508 = vld [vmem:[#allocation7 + $0x48] sm:$0xff]
    %v509 = vld [vmem:[#allocation7 + $0x50] sm:$0xff]
    %v510 = vld [vmem:[#allocation7 + $0x58] sm:$0xff]
    %v511 = vld [vmem:[#allocation7 + $0x60] sm:$0xff]
    %v512 = vld [vmem:[#allocation7 + $0x68] sm:$0xff]
    %v513 = vld [vmem:[#allocation7 + $0x70] sm:$0xff]
    %v514 = vld [vmem:[#allocation7 + $0x78] sm:$0xff]
    %v515 = vld [vmem:[%s4] sm:$0x1]
    %v517 = vperm.slane %v515, 0
    %vm521 = vcmask 1041409
    %v522 = vsel %vm521, %v498, %v461
    %524 = vmatpush.msra.mxu0 %v514
    %525 = vmatpush.msra.mxu0 %v513
    %526 = vmatpush.msra.mxu0 %v512
    %527 = vmatpush.msra.mxu0 %v511
    %528 = vmatpush.msra.mxu0 %v510
    %529 = vmatpush.msra.mxu0 %v509
    %530 = vmatpush.msra.mxu0 %v508
    %531 = vmatpush.msra.mxu0 %v507
    %532 = vmatpush.msra.mxu0 %v506
    %533 = vmatpush.msra.mxu0 %v505
    %534 = vmatpush.msra.mxu0 %v504
    %535 = vmatpush.msra.mxu0 %v503
    %536 = vmatpush.msra.mxu0 %v502
    %537 = vmatpush.msra.mxu0 %v501
    %538 = vmatpush.msra.mxu0 %v500
    %539 = vmatpush.msra.mxu0 %v499
    %540 = vmatmul.f32.gmra.mxu0 %v522
    %v541 = vpop.f32.mrf.mxu0
    %v542 = vadd.f32 %v517, %v541
    %543 = vdwg.mxu0
    %544 = vst [vmem:[#allocation8] sm:$0x3] %v542
    // Predicated region
    $region34: #{tpu_custom_call.1} parent=1 // pred_check
      _
    $region35: #{tpu_custom_call.1} parent=1 // pred_check_branch
      %546 = sbr.rel (0) target = $region37
    $region36: #{tpu_custom_call.1} parent=1 // pred_region
      %548 = vsyncadd [#allocation4], 0
      %s550 = sshll.u32 [#allocation8], 4
      %s551 = int_to_ptr.vmem [resolvable:$true] %s550
      %s552 = sshll.u32 %s5, 4
      %s553 = int_to_ptr.hbm [resolvable:$true] %s552
      %555 = dma.vmem_to_hbm [thread:$0]  %s551, 32, %s553, [#allocation4]
    $region37: #{tpu_custom_call.1} parent=1 // pred_fallthru
      _
    // Predicated region
    $region38: #{tpu_custom_call.1} parent=1 // pred_check
      _
    $region39: #{tpu_custom_call.1} parent=1 // pred_check_branch
      %557 = sbr.rel (0) target = $region41
    $region40: #{tpu_custom_call.1} parent=1 // pred_region
      %559 = dma.done [#allocation4], 32
    $region41: #{tpu_custom_call.1} parent=1 // pred_fallthru
      _
    %560 = vsyncpa [#allocation3], 1
    %561 = vsyncpa [#allocation6], 1
    %562 = vsyncpa [#allocation4], 1

</llo_original>
